<compile_context>
chip_gen: v7x
topology: tpu7x:2x2x1
jax: 0.10.0
libtpu: 0.0.40
codegen_flags: <defaults>
</compile_context>

<pallas_src>
import functools

import jax
import jax.numpy as jnp
from jax.experimental import pallas as pl
from jax.experimental.pallas import tpu as pltpu


def _merged_lengths(channels, height, width, kernel):
    """Lengths of the merged-feature axis after the W-pool and the H+W pool."""
    chw = channels * height * width
    l_w = chw - (kernel - 1)              # after stride-1 valid max over W
    l_hw = l_w - width * (kernel - 1)     # after stride-1 valid max over H
    return chw, l_w, l_hw


def _classifier_kernel(x_ref, w_ref, b_ref, o_ref, *, pool_k, row_len, l_w, l_hw):
    """Fused MaxPool2d(pool_k, stride, 0) + Flatten + Linear for one batch tile.

    x_ref: (TN, C*H*W)  merged-feature input tile (lane-dense)
    w_ref: (L,  Op)     merged-feature-expanded, out-padded linear weight (resident)
    b_ref: (1,  Op)     out-padded bias (resident)
    o_ref: (TN, Op)     padded output tile (lane-dense, unmasked store)
    """
    x = x_ref[...].astype(jnp.float32)      # upcast after load (v5e VPU has no bf16)

    # stride-1 "valid" max over W: unrolled lane-shifted maxima on the merged axis.
    u = x[:, 0:l_w]
    for kw in range(1, pool_k):
        u = jnp.maximum(u, x[:, kw:kw + l_w])

    # stride-1 "valid" max over H: shifts by whole rows on the merged axis.
    v = u[:, 0:l_hw]
    for kh in range(1, pool_k):
        off = kh * row_len
        v = jnp.maximum(v, u[:, off:off + l_hw])

    # Positions whose window crossed a row/channel boundary, or that sit at a
    # non-strided (h, w), carry unused values; their weight rows are zero, so
    # they contribute exactly 0 to the matmul below.
    # TODO(synk): nn.Dropout(p=0.7) is the identity in eval/inference mode; the
    # training-mode Bernoulli mask and 1/(1-p) scaling are intentionally not applied.

    y = jnp.dot(v, w_ref[...].astype(jnp.float32),
                preferred_element_type=jnp.float32)
    o_ref[...] = y + b_ref[...].astype(jnp.float32)


def prepare_classifier_params(w_t, b, *, channels, height, width,
                              kernel=5, stride=2):
    """Expand the nn.Linear weight/bias to the kernel's merged-feature layout.

    w_t : (C*Ho*Wo, out) -- torch Linear weight transposed to (in, out)
    b   : (out,)
    Build this ONCE and reuse it across forward calls (avoids a per-call
    scatter + extra HBM traffic).
    """
    ho_n = (height - kernel) // stride + 1
    wo_n = (width - kernel) // stride + 1
    f_real = channels * ho_n * wo_n
    assert w_t.shape[0] == f_real, (w_t.shape, f_real)
    out = w_t.shape[1]
    op = 128 * pl.cdiv(out, 128)          # lane-dense padded output width

    _, _, l_hw = _merged_lengths(channels, height, width, kernel)

    # Merged-feature row index of pooled position (c, ho, wo):
    #   row = c*H*W + (stride*ho)*W + stride*wo     (torch Flatten order: c, ho, wo)
    c_i, ho_i, wo_i = jnp.meshgrid(jnp.arange(channels), jnp.arange(ho_n),
                                   jnp.arange(wo_n), indexing="ij")
    rows = (c_i * (height * width) + (stride * ho_i) * width
            + stride * wo_i).reshape(-1)

    w_rows = jnp.zeros((f_real, op), w_t.dtype).at[:, :out].set(w_t)
    w_big = jnp.zeros((l_hw, op), w_t.dtype).at[rows].set(w_rows)
    b_pad = jnp.zeros((1, op), b.dtype).at[0, :out].set(b)

    return dict(w=w_big, b=b_pad, out_features=out,
                channels=channels, height=height, width=width,
                kernel=kernel, stride=stride)


def _pick_batch_tile(n):
    """Batch tile: fill the MXU M dim and amortize the ~0.35 us/step grid
    overhead, keep the per-step VMEM footprint at a few MiB (safe on v5e/v6e
    and under v7x's 64 MiB VMEM), and leave >=2 grid steps on large batches so
    v7x's second TensorCore gets work."""
    if n <= 128:
        return 8 * pl.cdiv(n, 8)          # single step, minimal zero-padding
    if n <= 512:
        return 128                        # 2-4 parallel steps
    return 256


def classifier_forward(x, params, *, batch_tile=None, transfer_dtype=None,
                       vmem_limit_bytes=32 * 1024 * 1024):
    """Forward of Classifier: MaxPool2d(k, s, 0) -> Dropout(eval) -> Flatten -> Linear.

    x      : (N, C, H, W) float array (NCHW, as in PyTorch)
    params : output of prepare_classifier_params (precomputed once)
    transfer_dtype : optional (e.g. jnp.bfloat16) dtype for the HBM transfer of
        x; compute/accumulation stay f32 inside the kernel.
    """
    n, c, h, w = x.shape
    kernel = params["kernel"]
    assert (c, h, w) == (params["channels"], params["height"], params["width"])
    chw, l_w, l_hw = _merged_lengths(c, h, w, kernel)
    w_big, b_pad = params["w"], params["b"]
    assert w_big.shape[0] == l_hw
    op = w_big.shape[1]
    out = params["out_features"]

    x2 = x.reshape(n, chw)                # metadata-only reshape, no copy
    if transfer_dtype is not None:
        x2 = x2.astype(transfer_dtype)

    tn = batch_tile if batch_tile is not None else _pick_batch_tile(n)
    tn = max(8, 8 * pl.cdiv(tn, 8))       # sublane-aligned batch tile
    n_grid = pl.cdiv(n, tn)
    n_pad = n_grid * tn
    if n_pad != n:                        # pad instead of hard-failing on odd batches
        x2 = jnp.pad(x2, ((0, n_pad - n), (0, 0)))

    kern = functools.partial(_classifier_kernel, pool_k=kernel, row_len=w,
                             l_w=l_w, l_hw=l_hw)

    y_pad = pl.pallas_call(
        kern,
        out_shape=jax.ShapeDtypeStruct((n_pad, op), jnp.float32),
        grid_spec=pltpu.PrefetchScalarGridSpec(
            num_scalar_prefetch=0,
            grid=(n_grid,),
            in_specs=[
                pl.BlockSpec((tn, chw), lambda i: (i, 0)),
                pl.BlockSpec((l_hw, op), lambda i: (0, 0)),   # weight stays resident
                pl.BlockSpec((1, op), lambda i: (0, 0)),      # bias stays resident
            ],
            out_specs=pl.BlockSpec((tn, op), lambda i: (i, 0)),
        ),
        compiler_params=pltpu.CompilerParams(
            dimension_semantics=("parallel",),   # pipelined; v7x shards batch steps
            vmem_limit_bytes=vmem_limit_bytes,   # explicit: v5e default scope is 16 MiB
        ),
    )(x2, w_big, b_pad)

    return y_pad[:n, :out]


if __name__ == "__main__":
    key = jax.random.PRNGKey(0)
    kx, kw, kb = jax.random.split(key, 3)

    # Small shapes consistent with the module's forward.
    N, C, H, W = 2, 4, 16, 16
    kernel, stride = 5, 2
    Ho = (H - kernel) // stride + 1           # 6
    Wo = (W - kernel) // stride + 1           # 6
    input_size = C * Ho * Wo                  # 144 == nn.Linear in_features
    output_size = 10

    x = jax.random.normal(kx, (N, C, H, W), dtype=jnp.float32)

    # Deterministic nn.Linear-style init: U(-1/sqrt(fan_in), 1/sqrt(fan_in)).
    bound = 1.0 / (input_size ** 0.5)
    w_torch = jax.random.uniform(kw, (output_size, input_size), jnp.float32,
                                 minval=-bound, maxval=bound)  # torch layout (out, in)
    b = jax.random.uniform(kb, (output_size,), jnp.float32,
                           minval=-bound, maxval=bound)
    w_t = jnp.asarray(w_torch.T)                               # (in, out)

    # Precompute the expanded weight/bias ONCE (reused across calls).
    params = prepare_classifier_params(w_t, b, channels=C, height=H, width=W,
                                       kernel=kernel, stride=stride)

    # f32 path (exact parity with the PyTorch eval-mode forward).
    y = classifier_forward(x, params)
    jax.block_until_ready(y)
    assert y.shape == (N, output_size) and y.dtype == jnp.float32

    # Pure-XLA reference (MaxPool -> Flatten -> Linear, eval dropout).
    pooled_ref = jax.lax.reduce_window(
        x, -jnp.inf, jax.lax.max,
        window_dimensions=(1, 1, kernel, kernel),
        window_strides=(1, 1, stride, stride),
        padding="VALID")
    y_ref = pooled_ref.reshape(N, -1) @ w_t + b
    assert jnp.allclose(y, y_ref, atol=1e-4, rtol=1e-4), \
        float(jnp.max(jnp.abs(y - y_ref)))

    # bf16-transfer path (halves the dominant HBM read of x; compute stays f32).
    y_bf16 = classifier_forward(x, params, transfer_dtype=jnp.bfloat16)
    jax.block_until_ready(y_bf16)
    pooled_bf16 = pooled_ref.astype(jnp.bfloat16).astype(jnp.float32)
    y_ref_bf16 = pooled_bf16.reshape(N, -1) @ w_t + b
    assert jnp.allclose(y_bf16, y_ref_bf16, atol=1e-4, rtol=1e-4), \
        float(jnp.max(jnp.abs(y_bf16 - y_ref_bf16)))

    print("KERNEL_OK")
</pallas_src>

<mosaic_0001>
module attributes {stable_mosaic.version = 11 : i64} {
  func.func @_classifier_kernel(%arg0: i32, %arg1: memref<8x1024xf32, #tpu.memory_space<vmem>>, %arg2: memref<956x128xf32, #tpu.memory_space<vmem>>, %arg3: memref<1x128xf32, #tpu.memory_space<vmem>>, %arg4: memref<8x128xf32, #tpu.memory_space<vmem>>) attributes {dimension_semantics = [#tpu.dimension_semantics<parallel>], iteration_bounds = array<i64: 1>, scalar_prefetch = 0 : i64, scratch_operands = 0 : i64, tpu.core_type = #tpu.core_type<tc>, window_params = [{transform_indices = @transform_0, window_bounds = array<i64: 8, 1024>}, {pipeline_mode = #tpu.pipeline_mode<synchronous>, transform_indices = @transform_1, window_bounds = array<i64: 956, 128>}, {pipeline_mode = #tpu.pipeline_mode<synchronous>, transform_indices = @transform_2, window_bounds = array<i64: 1, 128>}, {transform_indices = @transform_3, window_bounds = array<i64: 8, 128>}]} {
    %c0 = arith.constant 0 : index
    %c0_0 = arith.constant 0 : index
    %0 = vector.load %arg1[%c0, %c0_0] : memref<8x1024xf32, #tpu.memory_space<vmem>>, vector<8x1024xf32>
    %1 = vector.extract_strided_slice %0 {offsets = [0, 0], sizes = [8, 1020], strides = [1, 1]} : vector<8x1024xf32> to vector<8x1020xf32>
    %2 = vector.extract_strided_slice %0 {offsets = [0, 1], sizes = [8, 1020], strides = [1, 1]} : vector<8x1024xf32> to vector<8x1020xf32>
    %3 = arith.maximumf %1, %2 : vector<8x1020xf32>
    %4 = vector.extract_strided_slice %0 {offsets = [0, 2], sizes = [8, 1020], strides = [1, 1]} : vector<8x1024xf32> to vector<8x1020xf32>
    %5 = arith.maximumf %3, %4 : vector<8x1020xf32>
    %6 = vector.extract_strided_slice %0 {offsets = [0, 3], sizes = [8, 1020], strides = [1, 1]} : vector<8x1024xf32> to vector<8x1020xf32>
    %7 = arith.maximumf %5, %6 : vector<8x1020xf32>
    %8 = vector.extract_strided_slice %0 {offsets = [0, 4], sizes = [8, 1020], strides = [1, 1]} : vector<8x1024xf32> to vector<8x1020xf32>
    %9 = arith.maximumf %7, %8 : vector<8x1020xf32>
    %10 = vector.extract_strided_slice %9 {offsets = [0, 0], sizes = [8, 956], strides = [1, 1]} : vector<8x1020xf32> to vector<8x956xf32>
    %11 = vector.extract_strided_slice %9 {offsets = [0, 16], sizes = [8, 956], strides = [1, 1]} : vector<8x1020xf32> to vector<8x956xf32>
    %12 = arith.maximumf %10, %11 : vector<8x956xf32>
    %13 = vector.extract_strided_slice %9 {offsets = [0, 32], sizes = [8, 956], strides = [1, 1]} : vector<8x1020xf32> to vector<8x956xf32>
    %14 = arith.maximumf %12, %13 : vector<8x956xf32>
    %15 = vector.extract_strided_slice %9 {offsets = [0, 48], sizes = [8, 956], strides = [1, 1]} : vector<8x1020xf32> to vector<8x956xf32>
    %16 = arith.maximumf %14, %15 : vector<8x956xf32>
    %17 = vector.extract_strided_slice %9 {offsets = [0, 64], sizes = [8, 956], strides = [1, 1]} : vector<8x1020xf32> to vector<8x956xf32>
    %18 = arith.maximumf %16, %17 : vector<8x956xf32>
    %c0_1 = arith.constant 0 : index
    %c0_2 = arith.constant 0 : index
    %19 = vector.load %arg2[%c0_1, %c0_2] : memref<956x128xf32, #tpu.memory_space<vmem>>, vector<956x128xf32>
    %cst = arith.constant dense<0.000000e+00> : vector<8x128xf32>
    %20 = tpu.matmul %18, %19, %cst {dimension_numbers = #tpu.dot_dimension_numbers<[1], [0], [0], [1], [0, 0, 1, 1], [], []>} : vector<8x956xf32>, vector<956x128xf32>, vector<8x128xf32> -> vector<8x128xf32>
    %c0_3 = arith.constant 0 : index
    %c0_4 = arith.constant 0 : index
    %21 = vector.load %arg3[%c0_3, %c0_4] : memref<1x128xf32, #tpu.memory_space<vmem>>, vector<1x128xf32>
    %22 = vector.broadcast %21 : vector<1x128xf32> to vector<8x128xf32>
    %23 = arith.addf %20, %22 : vector<8x128xf32>
    %c0_5 = arith.constant 0 : index
    %c0_6 = arith.constant 0 : index
    %24 = vector.load %arg4[%c0_5, %c0_6] : memref<8x128xf32, #tpu.memory_space<vmem>>, vector<8x128xf32>
    tpu.vector_store %arg4[%c0_5, %c0_6], %23 {strides = array<i32>} : memref<8x128xf32, #tpu.memory_space<vmem>>, vector<8x128xf32>,
    return
  }
  func.func @transform_0(%arg0: i32) -> (i32, i32) {
    %c0_i32 = arith.constant 0 : i32
    %c0_i32_0 = arith.constant 0 : i32
    return %arg0, %c0_i32 : i32, i32
  }
  func.func @transform_1(%arg0: i32) -> (i32, i32) {
    %c0_i32 = arith.constant 0 : i32
    %c0_i32_0 = arith.constant 0 : i32
    %c0_i32_1 = arith.constant 0 : i32
    return %c0_i32, %c0_i32_0 : i32, i32
  }
  func.func @transform_2(%arg0: i32) -> (i32, i32) {
    %c0_i32 = arith.constant 0 : i32
    %c0_i32_0 = arith.constant 0 : i32
    %c0_i32_1 = arith.constant 0 : i32
    return %c0_i32, %c0_i32_0 : i32, i32
  }
  func.func @transform_3(%arg0: i32) -> (i32, i32) {
    %c0_i32 = arith.constant 0 : i32
    %c0_i32_0 = arith.constant 0 : i32
    return %arg0, %c0_i32 : i32, i32
  }
}

</mosaic_0001>

<llo_original>
// kernel: tpu_custom_call.1
$region0: #{tpu_custom_call.1}
  #allocation0 [shape = 'u32[]', space=smem, size = 0x4, offset = 0x4, fixed_abs, tag = 'smem constant byte address 0x4 - core index']
  #allocation1 [shape = 'u32[144,128]{1,0:T(1,128)}', space=vmem, size = 0x12000, scoped, tag = 'internal scratch']
  %s0 = inlined_call_operand.hbm [shape: f32[8,1024], index: 0, kind: input, shape index: {}]
  %s1 = inlined_call_operand.hbm [shape: f32[956,128], index: 1, kind: input, shape index: {}]
  %s2 = inlined_call_operand.vmem [shape: f32[1,128], index: 2, kind: input, shape index: {}]
  %s3 = inlined_call_operand.hbm [shape: f32[8,128], index: 3, kind: output, shape index: {}]
  %s4 = sld [smem:[#allocation0]]
  $region30: #{tpu_custom_call.1} parent=0
    _
  %s6 = ssub.s32 1, %s4
  %s7 = scalar_select 0, %s6, %s4
  $region1: #{tpu_custom_call.1} parent=0
    #allocation2 [shape = 'u8[32768]{0}', space=vmem, size = 0x8000, scoped, tag = 'input window, operand 0, single buffered']
    #allocation3 [shape = 's32[1]{0}', space=sflag, size = 0x4, scoped, tag = 'scoped memory for tpu_custom_call.1']
    #allocation4 [shape = 's32[1]{0}', space=sflag, size = 0x4, scoped, tag = 'scoped memory for tpu_custom_call.1']
    #allocation5 [shape = 'u8[491520]{0}', space=vmem, size = 0x78000, scoped, tag = 'input window, operand 1, single buffered']
    #allocation6 [shape = 's32[1]{0}', space=sflag, size = 0x4, scoped, tag = 'scoped memory for tpu_custom_call.1']
    #allocation7 [shape = 'u8[4096]{0}', space=vmem, size = 0x1000, scoped, tag = 'output window, operand 0, single buffered']
    %8 = vsyncpa [#allocation3], 0
    %9 = vsyncpa [#allocation6], 0
    %10 = vsyncpa [#allocation4], 0
    // Predicated region
    $region2: #{tpu_custom_call.1} parent=1 // pred_check
      _
    $region3: #{tpu_custom_call.1} parent=1 // pred_check_branch
      %12 = sbr.rel (0) target = $region5
    $region4: #{tpu_custom_call.1} parent=1 // pred_region
      %s14 = ssub.s32 1024, 1024
      %15 = vsyncadd [#allocation3], %s14
      %s17 = sshll.u32 [#allocation2], 4
      %s18 = int_to_ptr.vmem [resolvable:$true] %s17
      %20 = dma.hbm_to_vmem [thread:$0]  %s0, 1024, %s18, [#allocation3]
    $region5: #{tpu_custom_call.1} parent=1 // pred_fallthru
      _
    // Predicated region
    $region6: #{tpu_custom_call.1} parent=1 // pred_check
      _
    $region7: #{tpu_custom_call.1} parent=1 // pred_check_branch
      %22 = sbr.rel (0) target = $region9
    $region8: #{tpu_custom_call.1} parent=1 // pred_region
      %s24 = ssub.s32 15360, 15360
      %25 = vsyncadd [#allocation6], %s24
      %s26 = sshll.u32 [#allocation5], 4
      %s27 = int_to_ptr.vmem [resolvable:$true] %s26
      %32 = dma.hbm_to_vmem [thread:$0]  %s1, 15360, %s27, [#allocation6], 128, 128, 8
    $region9: #{tpu_custom_call.1} parent=1 // pred_fallthru
      _
    // Predicated region
    $region10: #{tpu_custom_call.1} parent=1 // pred_check
      _
    $region11: #{tpu_custom_call.1} parent=1 // pred_check_branch
      %34 = sbr.rel (0) target = $region13
    $region12: #{tpu_custom_call.1} parent=1 // pred_region
      _
    $region13: #{tpu_custom_call.1} parent=1 // pred_fallthru
      _
    // Predicated region
    $region14: #{tpu_custom_call.1} parent=1 // pred_check
      _
    $region15: #{tpu_custom_call.1} parent=1 // pred_check_branch
      %36 = sbr.rel (0) target = $region17
    $region16: #{tpu_custom_call.1} parent=1 // pred_region
      %37 = dma.done [#allocation3], 1024
    $region17: #{tpu_custom_call.1} parent=1 // pred_fallthru
      _
    // Predicated region
    $region18: #{tpu_custom_call.1} parent=1 // pred_check
      _
    $region19: #{tpu_custom_call.1} parent=1 // pred_check_branch
      %39 = sbr.rel (0) target = $region21
    $region20: #{tpu_custom_call.1} parent=1 // pred_region
      %40 = dma.done [#allocation6], 15360
    $region21: #{tpu_custom_call.1} parent=1 // pred_fallthru
      _
    %v41 = vld [vmem:[#allocation2] sm:$0xff]
    %v42 = vld [vmem:[#allocation2 + $0x8] sm:$0xff]
    %v43 = vld [vmem:[#allocation2 + $0x10] sm:$0xff]
    %v44 = vld [vmem:[#allocation2 + $0x18] sm:$0xff]
    %v45 = vld [vmem:[#allocation2 + $0x20] sm:$0xff]
    %v46 = vld [vmem:[#allocation2 + $0x28] sm:$0xff]
    %v47 = vld [vmem:[#allocation2 + $0x30] sm:$0xff]
    %v48 = vld [vmem:[#allocation2 + $0x38] sm:$0xff]
    %57 = vrot.lane.b32.xlu0 %v41, 127
    %v58 = vpop.permute.xlu0 %57
    %59 = vrot.lane.b32.xlu0 %v42, 127
    %v60 = vpop.permute.xlu0 %59
    %61 = vrot.lane.b32.xlu0 %v43, 127
    %v62 = vpop.permute.xlu0 %61
    %63 = vrot.lane.b32.xlu0 %v44, 127
    %v64 = vpop.permute.xlu0 %63
    %65 = vrot.lane.b32.xlu0 %v45, 127
    %v66 = vpop.permute.xlu0 %65
    %67 = vrot.lane.b32.xlu0 %v46, 127
    %v68 = vpop.permute.xlu0 %67
    %69 = vrot.lane.b32.xlu0 %v47, 127
    %v70 = vpop.permute.xlu0 %69
    %71 = vrot.lane.b32.xlu0 %v48, 127
    %v72 = vpop.permute.xlu0 %71
    %vm73 = vcmask 1039360
    %v74 = vsel %vm73, %v58, %v60
    %v75 = vsel %vm73, %v60, %v62
    %v76 = vsel %vm73, %v62, %v64
    %v77 = vsel %vm73, %v64, %v66
    %v78 = vsel %vm73, %v66, %v68
    %v79 = vsel %vm73, %v68, %v70
    %v80 = vsel %vm73, %v70, %v72
    %v89 = vmax.f32 %v41, %v74
    %v90 = vmax.f32 %v42, %v75
    %v91 = vmax.f32 %v43, %v76
    %v92 = vmax.f32 %v44, %v77
    %v93 = vmax.f32 %v45, %v78
    %v94 = vmax.f32 %v46, %v79
    %v95 = vmax.f32 %v47, %v80
    %v96 = vmax.f32 %v48, %v72
    %97 = vrot.lane.b32.xlu0 %v41, 126
    %v98 = vpop.permute.xlu0 %97
    %99 = vrot.lane.b32.xlu0 %v42, 126
    %v100 = vpop.permute.xlu0 %99
    %101 = vrot.lane.b32.xlu0 %v43, 126
    %v102 = vpop.permute.xlu0 %101
    %103 = vrot.lane.b32.xlu0 %v44, 126
    %v104 = vpop.permute.xlu0 %103
    %105 = vrot.lane.b32.xlu0 %v45, 126
    %v106 = vpop.permute.xlu0 %105
    %107 = vrot.lane.b32.xlu0 %v46, 126
    %v108 = vpop.permute.xlu0 %107
    %109 = vrot.lane.b32.xlu0 %v47, 126
    %v110 = vpop.permute.xlu0 %109
    %111 = vrot.lane.b32.xlu0 %v48, 126
    %v112 = vpop.permute.xlu0 %111
    %vm113 = vcmask 1031168
    %v114 = vsel %vm113, %v98, %v100
    %v115 = vsel %vm113, %v100, %v102
    %v116 = vsel %vm113, %v102, %v104
    %v117 = vsel %vm113, %v104, %v106
    %v118 = vsel %vm113, %v106, %v108
    %v119 = vsel %vm113, %v108, %v110
    %v120 = vsel %vm113, %v110, %v112
    %v129 = vmax.f32 %v89, %v114
    %v130 = vmax.f32 %v90, %v115
    %v131 = vmax.f32 %v91, %v116
    %v132 = vmax.f32 %v92, %v117
    %v133 = vmax.f32 %v93, %v118
    %v134 = vmax.f32 %v94, %v119
    %v135 = vmax.f32 %v95, %v120
    %v136 = vmax.f32 %v96, %v112
    %137 = vrot.lane.b32.xlu0 %v41, 125
    %v138 = vpop.permute.xlu0 %137
    %139 = vrot.lane.b32.xlu0 %v42, 125
    %v140 = vpop.permute.xlu0 %139
    %141 = vrot.lane.b32.xlu0 %v43, 125
    %v142 = vpop.permute.xlu0 %141
    %143 = vrot.lane.b32.xlu0 %v44, 125
    %v144 = vpop.permute.xlu0 %143
    %145 = vrot.lane.b32.xlu0 %v45, 125
    %v146 = vpop.permute.xlu0 %145
    %147 = vrot.lane.b32.xlu0 %v46, 125
    %v148 = vpop.permute.xlu0 %147
    %149 = vrot.lane.b32.xlu0 %v47, 125
    %v150 = vpop.permute.xlu0 %149
    %151 = vrot.lane.b32.xlu0 %v48, 125
    %v152 = vpop.permute.xlu0 %151
    %vm153 = vcmask 1022976
    %v154 = vsel %vm153, %v138, %v140
    %v155 = vsel %vm153, %v140, %v142
    %v156 = vsel %vm153, %v142, %v144
    %v157 = vsel %vm153, %v144, %v146
    %v158 = vsel %vm153, %v146, %v148
    %v159 = vsel %vm153, %v148, %v150
    %v160 = vsel %vm153, %v150, %v152
    %v169 = vmax.f32 %v129, %v154
    %v170 = vmax.f32 %v130, %v155
    %v171 = vmax.f32 %v131, %v156
    %v172 = vmax.f32 %v132, %v157
    %v173 = vmax.f32 %v133, %v158
    %v174 = vmax.f32 %v134, %v159
    %v175 = vmax.f32 %v135, %v160
    %v176 = vmax.f32 %v136, %v152
    %177 = vrot.lane.b32.xlu0 %v41, 124
    %v178 = vpop.permute.xlu0 %177
    %179 = vrot.lane.b32.xlu0 %v42, 124
    %v180 = vpop.permute.xlu0 %179
    %181 = vrot.lane.b32.xlu0 %v43, 124
    %v182 = vpop.permute.xlu0 %181
    %183 = vrot.lane.b32.xlu0 %v44, 124
    %v184 = vpop.permute.xlu0 %183
    %185 = vrot.lane.b32.xlu0 %v45, 124
    %v186 = vpop.permute.xlu0 %185
    %187 = vrot.lane.b32.xlu0 %v46, 124
    %v188 = vpop.permute.xlu0 %187
    %189 = vrot.lane.b32.xlu0 %v47, 124
    %v190 = vpop.permute.xlu0 %189
    %191 = vrot.lane.b32.xlu0 %v48, 124
    %v192 = vpop.permute.xlu0 %191
    %vm193 = vcmask 1014784
    %v194 = vsel %vm193, %v178, %v180
    %v195 = vsel %vm193, %v180, %v182
    %v196 = vsel %vm193, %v182, %v184
    %v197 = vsel %vm193, %v184, %v186
    %v198 = vsel %vm193, %v186, %v188
    %v199 = vsel %vm193, %v188, %v190
    %v200 = vsel %vm193, %v190, %v192
    %v209 = vmax.f32 %v169, %v194
    %v210 = vmax.f32 %v170, %v195
    %v211 = vmax.f32 %v171, %v196
    %v212 = vmax.f32 %v172, %v197
    %v213 = vmax.f32 %v173, %v198
    %v214 = vmax.f32 %v174, %v199
    %v215 = vmax.f32 %v175, %v200
    %v216 = vmax.f32 %v176, %v192
    %225 = vrot.lane.b32.xlu0 %v209, 112
    %v226 = vpop.permute.xlu0 %225
    %227 = vrot.lane.b32.xlu0 %v210, 112
    %v228 = vpop.permute.xlu0 %227
    %229 = vrot.lane.b32.xlu0 %v211, 112
    %v230 = vpop.permute.xlu0 %229
    %231 = vrot.lane.b32.xlu0 %v212, 112
    %v232 = vpop.permute.xlu0 %231
    %233 = vrot.lane.b32.xlu0 %v213, 112
    %v234 = vpop.permute.xlu0 %233
    %235 = vrot.lane.b32.xlu0 %v214, 112
    %v236 = vpop.permute.xlu0 %235
    %237 = vrot.lane.b32.xlu0 %v215, 112
    %v238 = vpop.permute.xlu0 %237
    %239 = vrot.lane.b32.xlu0 %v216, 112
    %v240 = vpop.permute.xlu0 %239
    %vm241 = vcmask 916480
    %v242 = vsel %vm241, %v226, %v228
    %v243 = vsel %vm241, %v228, %v230
    %v244 = vsel %vm241, %v230, %v232
    %v245 = vsel %vm241, %v232, %v234
    %v246 = vsel %vm241, %v234, %v236
    %v247 = vsel %vm241, %v236, %v238
    %v248 = vsel %vm241, %v238, %v240
    %v257 = vmax.f32 %v209, %v242
    %v258 = vmax.f32 %v210, %v243
    %v259 = vmax.f32 %v211, %v244
    %v260 = vmax.f32 %v212, %v245
    %v261 = vmax.f32 %v213, %v246
    %v262 = vmax.f32 %v214, %v247
    %v263 = vmax.f32 %v215, %v248
    %v264 = vmax.f32 %v216, %v240
    %265 = vrot.lane.b32.xlu0 %v209, 96
    %v266 = vpop.permute.xlu0 %265
    %267 = vrot.lane.b32.xlu0 %v210, 96
    %v268 = vpop.permute.xlu0 %267
    %269 = vrot.lane.b32.xlu0 %v211, 96
    %v270 = vpop.permute.xlu0 %269
    %271 = vrot.lane.b32.xlu0 %v212, 96
    %v272 = vpop.permute.xlu0 %271
    %273 = vrot.lane.b32.xlu0 %v213, 96
    %v274 = vpop.permute.xlu0 %273
    %275 = vrot.lane.b32.xlu0 %v214, 96
    %v276 = vpop.permute.xlu0 %275
    %277 = vrot.lane.b32.xlu0 %v215, 96
    %v278 = vpop.permute.xlu0 %277
    %279 = vrot.lane.b32.xlu0 %v216, 96
    %v280 = vpop.permute.xlu0 %279
    %vm281 = vcmask 785408
    %v282 = vsel %vm281, %v266, %v268
    %v283 = vsel %vm281, %v268, %v270
    %v284 = vsel %vm281, %v270, %v272
    %v285 = vsel %vm281, %v272, %v274
    %v286 = vsel %vm281, %v274, %v276
    %v287 = vsel %vm281, %v276, %v278
    %v288 = vsel %vm281, %v278, %v280
    %v297 = vmax.f32 %v257, %v282
    %v298 = vmax.f32 %v258, %v283
    %v299 = vmax.f32 %v259, %v284
    %v300 = vmax.f32 %v260, %v285
    %v301 = vmax.f32 %v261, %v286
    %v302 = vmax.f32 %v262, %v287
    %v303 = vmax.f32 %v263, %v288
    %v304 = vmax.f32 %v264, %v280
    %305 = vrot.lane.b32.xlu0 %v209, 80
    %v306 = vpop.permute.xlu0 %305
    %307 = vrot.lane.b32.xlu0 %v210, 80
    %v308 = vpop.permute.xlu0 %307
    %309 = vrot.lane.b32.xlu0 %v211, 80
    %v310 = vpop.permute.xlu0 %309
    %311 = vrot.lane.b32.xlu0 %v212, 80
    %v312 = vpop.permute.xlu0 %311
    %313 = vrot.lane.b32.xlu0 %v213, 80
    %v314 = vpop.permute.xlu0 %313
    %315 = vrot.lane.b32.xlu0 %v214, 80
    %v316 = vpop.permute.xlu0 %315
    %317 = vrot.lane.b32.xlu0 %v215, 80
    %v318 = vpop.permute.xlu0 %317
    %319 = vrot.lane.b32.xlu0 %v216, 80
    %v320 = vpop.permute.xlu0 %319
    %vm321 = vcmask 654336
    %v322 = vsel %vm321, %v306, %v308
    %v323 = vsel %vm321, %v308, %v310
    %v324 = vsel %vm321, %v310, %v312
    %v325 = vsel %vm321, %v312, %v314
    %v326 = vsel %vm321, %v314, %v316
    %v327 = vsel %vm321, %v316, %v318
    %v328 = vsel %vm321, %v318, %v320
    %v337 = vmax.f32 %v297, %v322
    %v338 = vmax.f32 %v298, %v323
    %v339 = vmax.f32 %v299, %v324
    %v340 = vmax.f32 %v300, %v325
    %v341 = vmax.f32 %v301, %v326
    %v342 = vmax.f32 %v302, %v327
    %v343 = vmax.f32 %v303, %v328
    %v344 = vmax.f32 %v304, %v320
    %345 = vrot.lane.b32.xlu0 %v209, 64
    %v346 = vpop.permute.xlu0 %345
    %347 = vrot.lane.b32.xlu0 %v210, 64
    %v348 = vpop.permute.xlu0 %347
    %349 = vrot.lane.b32.xlu0 %v211, 64
    %v350 = vpop.permute.xlu0 %349
    %351 = vrot.lane.b32.xlu0 %v212, 64
    %v352 = vpop.permute.xlu0 %351
    %353 = vrot.lane.b32.xlu0 %v213, 64
    %v354 = vpop.permute.xlu0 %353
    %355 = vrot.lane.b32.xlu0 %v214, 64
    %v356 = vpop.permute.xlu0 %355
    %357 = vrot.lane.b32.xlu0 %v215, 64
    %v358 = vpop.permute.xlu0 %357
    %359 = vrot.lane.b32.xlu0 %v216, 64
    %v360 = vpop.permute.xlu0 %359
    %vm361 = vcmask 523264
    %v362 = vsel %vm361, %v346, %v348
    %v363 = vsel %vm361, %v348, %v350
    %v364 = vsel %vm361, %v350, %v352
    %v365 = vsel %vm361, %v352, %v354
    %v366 = vsel %vm361, %v354, %v356
    %v367 = vsel %vm361, %v356, %v358
    %v368 = vsel %vm361, %v358, %v360
    %v377 = vmax.f32 %v337, %v362
    %v378 = vmax.f32 %v338, %v363
    %v379 = vmax.f32 %v339, %v364
    %v380 = vmax.f32 %v340, %v365
    %v381 = vmax.f32 %v341, %v366
    %v382 = vmax.f32 %v342, %v367
    %v383 = vmax.f32 %v343, %v368
    %v384 = vmax.f32 %v344, %v360
    %v385 = vld [vmem:[#allocation5] sm:$0xff]
    %v386 = vld [vmem:[#allocation5 + $0x8] sm:$0xff]
    %v387 = vld [vmem:[#allocation5 + $0x10] sm:$0xff]
    %v388 = vld [vmem:[#allocation5 + $0x18] sm:$0xff]
    %v389 = vld [vmem:[#allocation5 + $0x20] sm:$0xff]
    %v390 = vld [vmem:[#allocation5 + $0x28] sm:$0xff]
    %v391 = vld [vmem:[#allocation5 + $0x30] sm:$0xff]
    %v392 = vld [vmem:[#allocation5 + $0x38] sm:$0xff]
    %v393 = vld [vmem:[#allocation5 + $0x40] sm:$0xff]
    %v394 = vld [vmem:[#allocation5 + $0x48] sm:$0xff]
    %v395 = vld [vmem:[#allocation5 + $0x50] sm:$0xff]
    %v396 = vld [vmem:[#allocation5 + $0x58] sm:$0xff]
    %v397 = vld [vmem:[#allocation5 + $0x60] sm:$0xff]
    %v398 = vld [vmem:[#allocation5 + $0x68] sm:$0xff]
    %v399 = vld [vmem:[#allocation5 + $0x70] sm:$0xff]
    %v400 = vld [vmem:[#allocation5 + $0x78] sm:$0xff]
    %v401 = vld [vmem:[#allocation5 + $0x80] sm:$0xff]
    %v402 = vld [vmem:[#allocation5 + $0x88] sm:$0xff]
    %v403 = vld [vmem:[#allocation5 + $0x90] sm:$0xff]
    %v404 = vld [vmem:[#allocation5 + $0x98] sm:$0xff]
    %v405 = vld [vmem:[#allocation5 + $0xa0] sm:$0xff]
    %v406 = vld [vmem:[#allocation5 + $0xa8] sm:$0xff]
    %v407 = vld [vmem:[#allocation5 + $0xb0] sm:$0xff]
    %v408 = vld [vmem:[#allocation5 + $0xb8] sm:$0xff]
    %v409 = vld [vmem:[#allocation5 + $0xc0] sm:$0xff]
    %v410 = vld [vmem:[#allocation5 + $0xc8] sm:$0xff]
    %v411 = vld [vmem:[#allocation5 + $0xd0] sm:$0xff]
    %v412 = vld [vmem:[#allocation5 + $0xd8] sm:$0xff]
    %v413 = vld [vmem:[#allocation5 + $0xe0] sm:$0xff]
    %v414 = vld [vmem:[#allocation5 + $0xe8] sm:$0xff]
    %v415 = vld [vmem:[#allocation5 + $0xf0] sm:$0xff]
    %v416 = vld [vmem:[#allocation5 + $0xf8] sm:$0xff]
    %v417 = vld [vmem:[#allocation5 + $0x100] sm:$0xff]
    %v418 = vld [vmem:[#allocation5 + $0x108] sm:$0xff]
    %v419 = vld [vmem:[#allocation5 + $0x110] sm:$0xff]
    %v420 = vld [vmem:[#allocation5 + $0x118] sm:$0xff]
    %v421 = vld [vmem:[#allocation5 + $0x120] sm:$0xff]
    %v422 = vld [vmem:[#allocation5 + $0x128] sm:$0xff]
    %v423 = vld [vmem:[#allocation5 + $0x130] sm:$0xff]
    %v424 = vld [vmem:[#allocation5 + $0x138] sm:$0xff]
    %v425 = vld [vmem:[#allocation5 + $0x140] sm:$0xff]
    %v426 = vld [vmem:[#allocation5 + $0x148] sm:$0xff]
    %v427 = vld [vmem:[#allocation5 + $0x150] sm:$0xff]
    %v428 = vld [vmem:[#allocation5 + $0x158] sm:$0xff]
    %v429 = vld [vmem:[#allocation5 + $0x160] sm:$0xff]
    %v430 = vld [vmem:[#allocation5 + $0x168] sm:$0xff]
    %v431 = vld [vmem:[#allocation5 + $0x170] sm:$0xff]
    %v432 = vld [vmem:[#allocation5 + $0x178] sm:$0xff]
    %v433 = vld [vmem:[#allocation5 + $0x180] sm:$0xff]
    %v434 = vld [vmem:[#allocation5 + $0x188] sm:$0xff]
    %v435 = vld [vmem:[#allocation5 + $0x190] sm:$0xff]
    %v436 = vld [vmem:[#allocation5 + $0x198] sm:$0xff]
    %v437 = vld [vmem:[#allocation5 + $0x1a0] sm:$0xff]
    %v438 = vld [vmem:[#allocation5 + $0x1a8] sm:$0xff]
    %v439 = vld [vmem:[#allocation5 + $0x1b0] sm:$0xff]
    %v440 = vld [vmem:[#allocation5 + $0x1b8] sm:$0xff]
    %v441 = vld [vmem:[#allocation5 + $0x1c0] sm:$0xff]
    %v442 = vld [vmem:[#allocation5 + $0x1c8] sm:$0xff]
    %v443 = vld [vmem:[#allocation5 + $0x1d0] sm:$0xff]
    %v444 = vld [vmem:[#allocation5 + $0x1d8] sm:$0xff]
    %v445 = vld [vmem:[#allocation5 + $0x1e0] sm:$0xff]
    %v446 = vld [vmem:[#allocation5 + $0x1e8] sm:$0xff]
    %v447 = vld [vmem:[#allocation5 + $0x1f0] sm:$0xff]
    %v448 = vld [vmem:[#allocation5 + $0x1f8] sm:$0xff]
    %v449 = vld [vmem:[#allocation5 + $0x200] sm:$0xff]
    %v450 = vld [vmem:[#allocation5 + $0x208] sm:$0xff]
    %v451 = vld [vmem:[#allocation5 + $0x210] sm:$0xff]
    %v452 = vld [vmem:[#allocation5 + $0x218] sm:$0xff]
    %v453 = vld [vmem:[#allocation5 + $0x220] sm:$0xff]
    %v454 = vld [vmem:[#allocation5 + $0x228] sm:$0xff]
    %v455 = vld [vmem:[#allocation5 + $0x230] sm:$0xff]
    %v456 = vld [vmem:[#allocation5 + $0x238] sm:$0xff]
    %v457 = vld [vmem:[#allocation5 + $0x240] sm:$0xff]
    %v458 = vld [vmem:[#allocation5 + $0x248] sm:$0xff]
    %v459 = vld [vmem:[#allocation5 + $0x250] sm:$0xff]
    %v460 = vld [vmem:[#allocation5 + $0x258] sm:$0xff]
    %v461 = vld [vmem:[#allocation5 + $0x260] sm:$0xff]
    %v462 = vld [vmem:[#allocation5 + $0x268] sm:$0xff]
    %v463 = vld [vmem:[#allocation5 + $0x270] sm:$0xff]
    %v464 = vld [vmem:[#allocation5 + $0x278] sm:$0xff]
    %v465 = vld [vmem:[#allocation5 + $0x280] sm:$0xff]
    %v466 = vld [vmem:[#allocation5 + $0x288] sm:$0xff]
    %v467 = vld [vmem:[#allocation5 + $0x290] sm:$0xff]
    %v468 = vld [vmem:[#allocation5 + $0x298] sm:$0xff]
    %v469 = vld [vmem:[#allocation5 + $0x2a0] sm:$0xff]
    %v470 = vld [vmem:[#allocation5 + $0x2a8] sm:$0xff]
    %v471 = vld [vmem:[#allocation5 + $0x2b0] sm:$0xff]
    %v472 = vld [vmem:[#allocation5 + $0x2b8] sm:$0xff]
    %v473 = vld [vmem:[#allocation5 + $0x2c0] sm:$0xff]
    %v474 = vld [vmem:[#allocation5 + $0x2c8] sm:$0xff]
    %v475 = vld [vmem:[#allocation5 + $0x2d0] sm:$0xff]
    %v476 = vld [vmem:[#allocation5 + $0x2d8] sm:$0xff]
    %v477 = vld [vmem:[#allocation5 + $0x2e0] sm:$0xff]
    %v478 = vld [vmem:[#allocation5 + $0x2e8] sm:$0xff]
    %v479 = vld [vmem:[#allocation5 + $0x2f0] sm:$0xff]
    %v480 = vld [vmem:[#allocation5 + $0x2f8] sm:$0xff]
    %v481 = vld [vmem:[#allocation5 + $0x300] sm:$0xff]
    %v482 = vld [vmem:[#allocation5 + $0x308] sm:$0xff]
    %v483 = vld [vmem:[#allocation5 + $0x310] sm:$0xff]
    %v484 = vld [vmem:[#allocation5 + $0x318] sm:$0xff]
    %v485 = vld [vmem:[#allocation5 + $0x320] sm:$0xff]
    %v486 = vld [vmem:[#allocation5 + $0x328] sm:$0xff]
    %v487 = vld [vmem:[#allocation5 + $0x330] sm:$0xff]
    %v488 = vld [vmem:[#allocation5 + $0x338] sm:$0xff]
    %v489 = vld [vmem:[#allocation5 + $0x340] sm:$0xff]
    %v490 = vld [vmem:[#allocation5 + $0x348] sm:$0xff]
    %v491 = vld [vmem:[#allocation5 + $0x350] sm:$0xff]
    %v492 = vld [vmem:[#allocation5 + $0x358] sm:$0xff]
    %v493 = vld [vmem:[#allocation5 + $0x360] sm:$0xff]
    %v494 = vld [vmem:[#allocation5 + $0x368] sm:$0xff]
    %v495 = vld [vmem:[#allocation5 + $0x370] sm:$0xff]
    %v496 = vld [vmem:[#allocation5 + $0x378] sm:$0xff]
    %v497 = vld [vmem:[#allocation5 + $0x380] sm:$0xff]
    %v498 = vld [vmem:[#allocation5 + $0x388] sm:$0xff]
    %v499 = vld [vmem:[#allocation5 + $0x390] sm:$0xff]
    %v500 = vld [vmem:[#allocation5 + $0x398] sm:$0xff]
    %v501 = vld [vmem:[#allocation5 + $0x3a0] sm:$0xff]
    %v502 = vld [vmem:[#allocation5 + $0x3a8] sm:$0xff]
    %v503 = vld [vmem:[#allocation5 + $0x3b0] sm:$0xff]
    %v504 = vld [vmem:[#allocation5 + $0x3b8] sm:$0xf]
    %v505 = vld [vmem:[%s2] sm:$0x1]
    %v507 = vlaneseq
    %v508 = vshrl.u32 %v507, 7
    %v509 = vsub.s32 0, %v508
    %v510 = vrot.slane %v505, %v509
    %vm512 = vcmask 490496
    %v514 = vsel %vm512, %v384, 0
    %vm516 = vcmask 1043456
    %v518 = vsel %vm516, %v504, 0
    %520 = vmatprep.subr.mxu0 0.0
    %521 = vmatpush1.msra.mxu0 %v385
    %522 = vmatprep.subr.mxu0 0.0
    %523 = vmatpush1.msra.mxu0 %v386
    %524 = vmatprep.subr.mxu0 0.0
    %525 = vmatpush1.msra.mxu0 %v387
    %526 = vmatprep.subr.mxu0 0.0
    %527 = vmatpush1.msra.mxu0 %v388
    %528 = vmatprep.subr.mxu0 0.0
    %529 = vmatpush1.msra.mxu0 %v389
    %530 = vmatprep.subr.mxu0 0.0
    %531 = vmatpush1.msra.mxu0 %v390
    %532 = vmatprep.subr.mxu0 0.0
    %533 = vmatpush1.msra.mxu0 %v391
    %534 = vmatprep.subr.mxu0 0.0
    %535 = vmatpush1.msra.mxu0 %v392
    %536 = vmatprep.subr.mxu0 0.0
    %537 = vmatpush1.msra.mxu0 %v393
    %538 = vmatprep.subr.mxu0 0.0
    %539 = vmatpush1.msra.mxu0 %v394
    %540 = vmatprep.subr.mxu0 0.0
    %541 = vmatpush1.msra.mxu0 %v395
    %542 = vmatprep.subr.mxu0 0.0
    %543 = vmatpush1.msra.mxu0 %v396
    %544 = vmatprep.subr.mxu0 0.0
    %545 = vmatpush1.msra.mxu0 %v397
    %546 = vmatprep.subr.mxu0 0.0
    %547 = vmatpush1.msra.mxu0 %v398
    %548 = vmatprep.subr.mxu0 0.0
    %549 = vmatpush1.msra.mxu0 %v399
    %550 = vmatprep.subr.mxu0 0.0
    %551 = vmatpush1.msra.mxu0 %v400
    %552 = vmatprep.subr.mxu0 0.0
    %553 = vmatpush1.msra.mxu0 %v401
    %554 = vmatprep.subr.mxu0 0.0
    %555 = vmatpush1.msra.mxu0 %v402
    %556 = vmatprep.subr.mxu0 0.0
    %557 = vmatpush1.msra.mxu0 %v403
    %558 = vmatprep.subr.mxu0 0.0
    %559 = vmatpush1.msra.mxu0 %v404
    %560 = vmatprep.subr.mxu0 0.0
    %561 = vmatpush1.msra.mxu0 %v405
    %562 = vmatprep.subr.mxu0 0.0
    %563 = vmatpush1.msra.mxu0 %v406
    %564 = vmatprep.subr.mxu0 0.0
    %565 = vmatpush1.msra.mxu0 %v407
    %566 = vmatprep.subr.mxu0 0.0
    %567 = vmatpush1.msra.mxu0 %v408
    %568 = vmatprep.subr.mxu0 0.0
    %569 = vmatpush1.msra.mxu0 %v409
    %570 = vmatprep.subr.mxu0 0.0
    %571 = vmatpush1.msra.mxu0 %v410
    %572 = vmatprep.subr.mxu0 0.0
    %573 = vmatpush1.msra.mxu0 %v411
    %574 = vmatprep.subr.mxu0 0.0
    %575 = vmatpush1.msra.mxu0 %v412
    %576 = vmatprep.subr.mxu0 0.0
    %577 = vmatpush1.msra.mxu0 %v413
    %578 = vmatprep.subr.mxu0 0.0
    %579 = vmatpush1.msra.mxu0 %v414
    %580 = vmatprep.subr.mxu0 0.0
    %581 = vmatpush1.msra.mxu0 %v415
    %582 = vmatprep.subr.mxu0 0.0
    %583 = vmatpush1.msra.mxu0 %v416
    %584 = vmatprep.mubr.f32.mxu0 %v378
    %585 = vmatmul.mubr.f32.gmra.mrb[0].mxu0 %v377
    %v586 = vpop.f32.mrb[0].mxu0
    %v587 = vadd.f32 %v510, %v586
    %v588 = vpop.f32.mrb[0].mxu0
    %589 = vdwg.mxu0
    %590 = vmatprep.subr.mxu0 0.0
    %591 = vmatpush1.msra.mxu0 %v417
    %592 = vmatprep.subr.mxu0 0.0
    %593 = vmatpush1.msra.mxu0 %v418
    %594 = vmatprep.subr.mxu0 0.0
    %595 = vmatpush1.msra.mxu0 %v419
    %596 = vmatprep.subr.mxu0 0.0
    %597 = vmatpush1.msra.mxu0 %v420
    %598 = vmatprep.subr.mxu0 0.0
    %599 = vmatpush1.msra.mxu0 %v421
    %600 = vmatprep.subr.mxu0 0.0
    %601 = vmatpush1.msra.mxu0 %v422
    %602 = vmatprep.subr.mxu0 0.0
    %603 = vmatpush1.msra.mxu0 %v423
    %604 = vmatprep.subr.mxu0 0.0
    %605 = vmatpush1.msra.mxu0 %v424
    %606 = vmatprep.subr.mxu0 0.0
    %607 = vmatpush1.msra.mxu0 %v425
    %608 = vmatprep.subr.mxu0 0.0
    %609 = vmatpush1.msra.mxu0 %v426
    %610 = vmatprep.subr.mxu0 0.0
    %611 = vmatpush1.msra.mxu0 %v427
    %612 = vmatprep.subr.mxu0 0.0
    %613 = vmatpush1.msra.mxu0 %v428
    %614 = vmatprep.subr.mxu0 0.0
    %615 = vmatpush1.msra.mxu0 %v429
    %616 = vmatprep.subr.mxu0 0.0
    %617 = vmatpush1.msra.mxu0 %v430
    %618 = vmatprep.subr.mxu0 0.0
    %619 = vmatpush1.msra.mxu0 %v431
    %620 = vmatprep.subr.mxu0 0.0
    %621 = vmatpush1.msra.mxu0 %v432
    %622 = vmatprep.subr.mxu0 0.0
    %623 = vmatpush1.msra.mxu0 %v433
    %624 = vmatprep.subr.mxu0 0.0
    %625 = vmatpush1.msra.mxu0 %v434
    %626 = vmatprep.subr.mxu0 0.0
    %627 = vmatpush1.msra.mxu0 %v435
    %628 = vmatprep.subr.mxu0 0.0
    %629 = vmatpush1.msra.mxu0 %v436
    %630 = vmatprep.subr.mxu0 0.0
    %631 = vmatpush1.msra.mxu0 %v437
    %632 = vmatprep.subr.mxu0 0.0
    %633 = vmatpush1.msra.mxu0 %v438
    %634 = vmatprep.subr.mxu0 0.0
    %635 = vmatpush1.msra.mxu0 %v439
    %636 = vmatprep.subr.mxu0 0.0
    %637 = vmatpush1.msra.mxu0 %v440
    %638 = vmatprep.subr.mxu0 0.0
    %639 = vmatpush1.msra.mxu0 %v441
    %640 = vmatprep.subr.mxu0 0.0
    %641 = vmatpush1.msra.mxu0 %v442
    %642 = vmatprep.subr.mxu0 0.0
    %643 = vmatpush1.msra.mxu0 %v443
    %644 = vmatprep.subr.mxu0 0.0
    %645 = vmatpush1.msra.mxu0 %v444
    %646 = vmatprep.subr.mxu0 0.0
    %647 = vmatpush1.msra.mxu0 %v445
    %648 = vmatprep.subr.mxu0 0.0
    %649 = vmatpush1.msra.mxu0 %v446
    %650 = vmatprep.subr.mxu0 0.0
    %651 = vmatpush1.msra.mxu0 %v447
    %652 = vmatprep.subr.mxu0 0.0
    %653 = vmatpush1.msra.mxu0 %v448
    %654 = vmatprep.mubr.f32.mxu0 %v380
    %655 = vmatmul.mubr.f32.gmra.mrb[0].mxu0 %v379
    %v656 = vpop.f32.mrb[0].mxu0
    %v657 = vadd.f32 %v587, %v656
    %v658 = vpop.f32.mrb[0].mxu0
    %659 = vdwg.mxu0
    %660 = vmatprep.subr.mxu0 0.0
    %661 = vmatpush1.msra.mxu0 %v449
    %662 = vmatprep.subr.mxu0 0.0
    %663 = vmatpush1.msra.mxu0 %v450
    %664 = vmatprep.subr.mxu0 0.0
    %665 = vmatpush1.msra.mxu0 %v451
    %666 = vmatprep.subr.mxu0 0.0
    %667 = vmatpush1.msra.mxu0 %v452
    %668 = vmatprep.subr.mxu0 0.0
    %669 = vmatpush1.msra.mxu0 %v453
    %670 = vmatprep.subr.mxu0 0.0
    %671 = vmatpush1.msra.mxu0 %v454
    %672 = vmatprep.subr.mxu0 0.0
    %673 = vmatpush1.msra.mxu0 %v455
    %674 = vmatprep.subr.mxu0 0.0
    %675 = vmatpush1.msra.mxu0 %v456
    %676 = vmatprep.subr.mxu0 0.0
    %677 = vmatpush1.msra.mxu0 %v457
    %678 = vmatprep.subr.mxu0 0.0
    %679 = vmatpush1.msra.mxu0 %v458
    %680 = vmatprep.subr.mxu0 0.0
    %681 = vmatpush1.msra.mxu0 %v459
    %682 = vmatprep.subr.mxu0 0.0
    %683 = vmatpush1.msra.mxu0 %v460
    %684 = vmatprep.subr.mxu0 0.0
    %685 = vmatpush1.msra.mxu0 %v461
    %686 = vmatprep.subr.mxu0 0.0
    %687 = vmatpush1.msra.mxu0 %v462
    %688 = vmatprep.subr.mxu0 0.0
    %689 = vmatpush1.msra.mxu0 %v463
    %690 = vmatprep.subr.mxu0 0.0
    %691 = vmatpush1.msra.mxu0 %v464
    %692 = vmatprep.subr.mxu0 0.0
    %693 = vmatpush1.msra.mxu0 %v465
    %694 = vmatprep.subr.mxu0 0.0
    %695 = vmatpush1.msra.mxu0 %v466
    %696 = vmatprep.subr.mxu0 0.0
    %697 = vmatpush1.msra.mxu0 %v467
    %698 = vmatprep.subr.mxu0 0.0
    %699 = vmatpush1.msra.mxu0 %v468
    %700 = vmatprep.subr.mxu0 0.0
    %701 = vmatpush1.msra.mxu0 %v469
    %702 = vmatprep.subr.mxu0 0.0
    %703 = vmatpush1.msra.mxu0 %v470
    %704 = vmatprep.subr.mxu0 0.0
    %705 = vmatpush1.msra.mxu0 %v471
    %706 = vmatprep.subr.mxu0 0.0
    %707 = vmatpush1.msra.mxu0 %v472
    %708 = vmatprep.subr.mxu0 0.0
    %709 = vmatpush1.msra.mxu0 %v473
    %710 = vmatprep.subr.mxu0 0.0
    %711 = vmatpush1.msra.mxu0 %v474
    %712 = vmatprep.subr.mxu0 0.0
    %713 = vmatpush1.msra.mxu0 %v475
    %714 = vmatprep.subr.mxu0 0.0
    %715 = vmatpush1.msra.mxu0 %v476
    %716 = vmatprep.subr.mxu0 0.0
    %717 = vmatpush1.msra.mxu0 %v477
    %718 = vmatprep.subr.mxu0 0.0
    %719 = vmatpush1.msra.mxu0 %v478
    %720 = vmatprep.subr.mxu0 0.0
    %721 = vmatpush1.msra.mxu0 %v479
    %722 = vmatprep.subr.mxu0 0.0
    %723 = vmatpush1.msra.mxu0 %v480
    %724 = vmatprep.mubr.f32.mxu0 %v382
    %725 = vmatmul.mubr.f32.gmra.mrb[0].mxu0 %v381
    %v726 = vpop.f32.mrb[0].mxu0
    %v727 = vadd.f32 %v657, %v726
    %v728 = vpop.f32.mrb[0].mxu0
    %729 = vdwg.mxu0
    %730 = vmatprep.subr.mxu0 0.0
    %731 = vmatpush1.msra.mxu0 %v481
    %732 = vmatprep.subr.mxu0 0.0
    %733 = vmatpush1.msra.mxu0 %v482
    %734 = vmatprep.subr.mxu0 0.0
    %735 = vmatpush1.msra.mxu0 %v483
    %736 = vmatprep.subr.mxu0 0.0
    %737 = vmatpush1.msra.mxu0 %v484
    %738 = vmatprep.subr.mxu0 0.0
    %739 = vmatpush1.msra.mxu0 %v485
    %740 = vmatprep.subr.mxu0 0.0
    %741 = vmatpush1.msra.mxu0 %v486
    %742 = vmatprep.subr.mxu0 0.0
    %743 = vmatpush1.msra.mxu0 %v487
    %744 = vmatprep.subr.mxu0 0.0
    %745 = vmatpush1.msra.mxu0 %v488
    %746 = vmatprep.subr.mxu0 0.0
    %747 = vmatpush1.msra.mxu0 %v489
    %748 = vmatprep.subr.mxu0 0.0
    %749 = vmatpush1.msra.mxu0 %v490
    %750 = vmatprep.subr.mxu0 0.0
    %751 = vmatpush1.msra.mxu0 %v491
    %752 = vmatprep.subr.mxu0 0.0
    %753 = vmatpush1.msra.mxu0 %v492
    %754 = vmatprep.subr.mxu0 0.0
    %755 = vmatpush1.msra.mxu0 %v493
    %756 = vmatprep.subr.mxu0 0.0
    %757 = vmatpush1.msra.mxu0 %v494
    %758 = vmatprep.subr.mxu0 0.0
    %759 = vmatpush1.msra.mxu0 %v495
    %760 = vmatprep.subr.mxu0 0.0
    %761 = vmatpush1.msra.mxu0 %v496
    %762 = vmatprep.subr.mxu0 0.0
    %763 = vmatpush1.msra.mxu0 %v497
    %764 = vmatprep.subr.mxu0 0.0
    %765 = vmatpush1.msra.mxu0 %v498
    %766 = vmatprep.subr.mxu0 0.0
    %767 = vmatpush1.msra.mxu0 %v499
    %768 = vmatprep.subr.mxu0 0.0
    %769 = vmatpush1.msra.mxu0 %v500
    %770 = vmatprep.subr.mxu0 0.0
    %771 = vmatpush1.msra.mxu0 %v501
    %772 = vmatprep.subr.mxu0 0.0
    %773 = vmatpush1.msra.mxu0 %v502
    %774 = vmatprep.subr.mxu0 0.0
    %775 = vmatpush1.msra.mxu0 %v503
    %776 = vmatprep.subr.mxu0 0.0
    %777 = vmatpush1.msra.mxu0 %v518
    %778 = vmatprep.subr.mxu0 0.0
    %779 = vmatpush1.msra.mxu0 0.0
    %780 = vmatprep.subr.mxu0 0.0
    %781 = vmatpush1.msra.mxu0 0.0
    %782 = vmatprep.subr.mxu0 0.0
    %783 = vmatpush1.msra.mxu0 0.0
    %784 = vmatprep.subr.mxu0 0.0
    %785 = vmatpush1.msra.mxu0 0.0
    %786 = vmatprep.subr.mxu0 0.0
    %787 = vmatpush1.msra.mxu0 0.0
    %788 = vmatprep.subr.mxu0 0.0
    %789 = vmatpush1.msra.mxu0 0.0
    %790 = vmatprep.subr.mxu0 0.0
    %791 = vmatpush1.msra.mxu0 0.0
    %792 = vmatprep.subr.mxu0 0.0
    %793 = vmatpush1.msra.mxu0 0.0
    %794 = vmatprep.mubr.f32.mxu0 %v514
    %795 = vmatmul.mubr.f32.gmra.mrb[0].mxu0 %v383
    %v796 = vpop.f32.mrb[0].mxu0
    %v797 = vadd.f32 %v727, %v796
    %v798 = vpop.f32.mrb[0].mxu0
    %799 = vdwg.mxu0
    %800 = vst [vmem:[#allocation7] sm:$0xff] %v797
    // Predicated region
    $region22: #{tpu_custom_call.1} parent=1 // pred_check
      _
    $region23: #{tpu_custom_call.1} parent=1 // pred_check_branch
      %802 = sbr.rel (0) target = $region25
    $region24: #{tpu_custom_call.1} parent=1 // pred_region
      %s804 = ssub.s32 128, 128
      %805 = vsyncadd [#allocation4], %s804
      %s807 = sshll.u32 [#allocation7], 4
      %s808 = int_to_ptr.vmem [resolvable:$true] %s807
      %810 = dma.vmem_to_hbm [thread:$0]  %s808, 128, %s3, [#allocation4]
    $region25: #{tpu_custom_call.1} parent=1 // pred_fallthru
      _
    // Predicated region
    $region26: #{tpu_custom_call.1} parent=1 // pred_check
      _
    $region27: #{tpu_custom_call.1} parent=1 // pred_check_branch
      %812 = sbr.rel (0) target = $region29
    $region28: #{tpu_custom_call.1} parent=1 // pred_region
      %813 = dma.done [#allocation4], 128
    $region29: #{tpu_custom_call.1} parent=1 // pred_fallthru
      _
    %814 = vsyncpa [#allocation3], 1
    %815 = vsyncpa [#allocation6], 1
    %816 = vsyncpa [#allocation4], 1

</llo_original>
